<compile_context>
chip_gen: v6e
topology: v6e:2x2x1
jax: 0.10.0
libtpu: 0.0.40
codegen_flags: <defaults>
</compile_context>

<pallas_src>
import jax
import jax.numpy as jnp
from jax.experimental import pallas as pl
from jax.experimental.pallas import tpu as pltpu

# EDM-style constants for the synthetic sigma sampler / weighting / denoiser.
SIGMA_DATA = 0.5
P_MEAN = -1.2
P_STD = 1.2


def _pick_chunk_width(HW, target=512):
    """Static per-channel lane-chunk width: a divisor of HW that is a multiple
    of 128 and <= target, or HW itself when HW is not 128-aligned."""
    if HW % 128 != 0:
        # TODO(synk): non-128-aligned spatial sizes make the per-channel slices
        # cross (8,128) tiles (a perf cliff, not a numerics issue).
        return HW
    best = 128
    cw = 128
    while cw <= min(HW, target):
        if HW % cw == 0:
            best = cw
        cw += 128
    return best


def _pick_batch_tile(B, bytes_per_sample, *, budget_bytes=2 << 20, sublane=16):
    """Batch tile: divides B, sublane-packed, fits the per-block VMEM budget,
    and (for large B) leaves >= 2-4 grid steps for pipelining / megacore."""
    budget_cap = max(1, budget_bytes // max(1, bytes_per_sample))
    if B >= 4 * sublane:
        steps = 4          # DMA/compute overlap + v7x TensorCore sharding
    elif B >= 2 * sublane:
        steps = 2          # at least keep both v7x TensorCores busy
    else:
        steps = 1          # tiny batch: per-step overhead would dominate
    step_cap = max(1, B // steps)
    divisors = [d for d in range(1, B + 1) if B % d == 0]

    def best(pred):
        cands = [d for d in divisors if pred(d)]
        return max(cands) if cands else None

    bt = best(lambda d: d % sublane == 0 and d <= budget_cap and d <= step_cap)
    if bt is None:                                   # relax to 8-row packing
        bt = best(lambda d: d % 8 == 0 and d <= budget_cap and d <= step_cap)
    if bt is None:                                   # relax the step preference
        bt = best(lambda d: (d % 8 == 0 or d == B) and d <= budget_cap)
    if bt is None:
        # TODO(synk): per-sample latent exceeds the block budget; the right fix
        # is a second "arbitrary" grid axis over the lane dim with a (bt, 1)
        # accumulator scratch + pl.when init/finalize, not shrinking bt more.
        bt = B
    return bt


def _make_kernel(C, HW, chunk_w):
    n_chunks = HW // chunk_w

    def kernel(wmat_sref, scal_ref, x_ref, noise_ref, out_ref):
        # wmat_sref: (C, C)      f32 SMEM (scalar-prefetched 1x1-conv weights)
        # scal_ref:  (bt, 4)     f32 VMEM [sigma, c_skip, c_in*c_out, w/(C*HW)]
        # x_ref:     (bt, C*HW)  bf16/f32 VMEM (input == target)
        # noise_ref: (bt, C*HW)  bf16/f32 VMEM
        # out_ref:   (bt, 1)     f32 VMEM (per-sample loss)
        scal = scal_ref[...]
        sig = scal[:, 0:1]
        c_skip = scal[:, 1:2]
        s_net = scal[:, 2:3]            # == c_in * c_out
        w_scale = scal[:, 3:4]          # == EDM weight / (C*HW)
        bt = scal.shape[0]

        # Loop-invariant scalar weights (SMEM reads hoisted out of the loops).
        wv = [[wmat_sref[o, c] for c in range(C)] for o in range(C)]

        acc = jnp.zeros((bt, 1), jnp.float32)
        # Static, 128-aligned lane chunking bounds the f32 working set to a
        # few (bt, chunk_w) temporaries per iteration.
        for ci in range(n_chunks):
            lo = ci * chunk_w
            # z_c = x_c + sigma * noise_c for every input channel of the chunk.
            zs = []
            for c in range(C):
                xc = x_ref[:, c * HW + lo: c * HW + lo + chunk_w].astype(jnp.float32)
                nc = noise_ref[:, c * HW + lo: c * HW + lo + chunk_w].astype(jnp.float32)
                zs.append(xc + sig * nc)
            # Squared residual accumulated elementwise across the C output
            # channels, lane-reduced once per chunk.
            sq = jnp.zeros((bt, chunk_w), jnp.float32)
            for o in range(C):
                net_o = wv[o][0] * zs[0]              # VPU broadcast-FMAs
                for c in range(1, C):
                    net_o = net_o + wv[o][c] * zs[c]
                x_o = x_ref[:, o * HW + lo: o * HW + lo + chunk_w].astype(jnp.float32)
                # predict - target, with c_in/c_out folded into s_net.
                diff = c_skip * zs[o] - x_o + s_net * net_o
                sq = sq + diff * diff
            acc = acc + jnp.sum(sq, axis=-1, keepdims=True)

        out_ref[...] = w_scale * acc

    return kernel


def standard_diffusion_loss(x_nchw, noise_nchw, sigmas, wmat):
    """Per-sample StandardDiffusionLoss (l2, no extras); returns shape (B,)."""
    B, C, H, W = x_nchw.shape
    HW = H * W
    x2 = x_nchw.reshape(B, C * HW)
    n2 = noise_nchw.reshape(B, C * HW)

    # Per-sample scalars, precomputed once in XLA (no in-kernel div / rsqrt):
    #   z = x + sigma*noise ; net = W @ z
    #   diff = c_skip*z - x + (c_in*c_out)*net ; loss = w/(C*HW) * sum(diff^2)
    sig = sigmas.astype(jnp.float32).reshape(B, 1)
    s2 = sig * sig
    sd2 = jnp.float32(SIGMA_DATA * SIGMA_DATA)
    denom = s2 + sd2
    c_skip = sd2 / denom
    s_net = sig * SIGMA_DATA / denom                     # c_in * c_out
    w_scale = denom / (s2 * sd2) / jnp.float32(C * HW)   # EDM weight / (C*HW)
    scal = jnp.concatenate([sig, c_skip, s_net, w_scale], axis=1)  # (B, 4) f32

    bt = _pick_batch_tile(B, C * HW * x2.dtype.itemsize)
    assert B % bt == 0, (B, bt)
    grid = (B // bt,)
    chunk_w = _pick_chunk_width(HW)

    block_bytes = bt * C * HW * x2.dtype.itemsize
    # 2 inputs x 2 pipeline buffers + chunk-sized f32 temporaries + slack;
    # clamped so it is safe on v5e (16 MiB scoped) and v7x (32 MiB scoped).
    vmem_limit = int(min(32 << 20, max(16 << 20, 8 * block_bytes)))

    out = pl.pallas_call(
        _make_kernel(C, HW, chunk_w),
        out_shape=jax.ShapeDtypeStruct((B, 1), jnp.float32),
        grid_spec=pltpu.PrefetchScalarGridSpec(
            num_scalar_prefetch=1,  # wmat -> SMEM
            grid=grid,
            in_specs=[
                pl.BlockSpec((bt, 4), lambda i, wref: (i, 0)),
                pl.BlockSpec((bt, C * HW), lambda i, wref: (i, 0)),
                pl.BlockSpec((bt, C * HW), lambda i, wref: (i, 0)),
            ],
            out_specs=pl.BlockSpec((bt, 1), lambda i, wref: (i, 0)),
        ),
        compiler_params=pltpu.CompilerParams(
            dimension_semantics=("parallel",),  # batch samples are independent
            vmem_limit_bytes=vmem_limit),
    )(wmat.astype(jnp.float32), scal, x2, n2)
    return out[:, 0]


def _reference(x_nchw, noise_nchw, sigmas, wmat):
    """Plain-JAX reference of the same forward (for correctness checking)."""
    B = x_nchw.shape[0]
    x = x_nchw.astype(jnp.float32)
    noise = noise_nchw.astype(jnp.float32)
    sig = sigmas.astype(jnp.float32).reshape(B, 1, 1, 1)
    noised = x + noise * sig
    s2, sd2 = sig * sig, SIGMA_DATA * SIGMA_DATA
    c_skip = sd2 / (s2 + sd2)
    c_out = sig * SIGMA_DATA / jnp.sqrt(s2 + sd2)
    c_in = 1.0 / jnp.sqrt(s2 + sd2)
    net_out = jnp.einsum("oc,bchw->bohw", wmat.astype(jnp.float32), c_in * noised)
    predict = c_skip * noised + c_out * net_out
    w = (s2 + sd2) / (s2 * sd2)
    return jnp.mean((w * (predict - x) ** 2).reshape(B, -1), axis=1)


def _run_case(key, B, C, H, W):
    k_x, k_noise, k_sigma, k_w = jax.random.split(key, 4)
    # bf16 activations/noise (the kernel upcasts to f32 internally).
    x = jax.random.normal(k_x, (B, C, H, W), dtype=jnp.float32).astype(jnp.bfloat16)
    noise = jax.random.normal(k_noise, (B, C, H, W), dtype=jnp.float32).astype(jnp.bfloat16)
    # sigma_sampler: EDM log-normal sigma per batch element.
    sigmas = jnp.exp(P_MEAN + P_STD * jax.random.normal(k_sigma, (B,), dtype=jnp.float32))
    # deterministic "network" weights (1x1 conv, C x C): identity + perturbation.
    wmat = jnp.eye(C, dtype=jnp.float32) + 0.05 * jax.random.normal(k_w, (C, C), dtype=jnp.float32)

    loss = jax.block_until_ready(standard_diffusion_loss(x, noise, sigmas, wmat))
    ref = _reference(x, noise, sigmas, wmat)
    assert loss.shape == (B,)
    assert jnp.allclose(loss, ref, rtol=2e-3, atol=1e-5), (loss, ref)


if __name__ == "__main__":
    key = jax.random.PRNGKey(0)
    k1, k2 = jax.random.split(key)
    # Small demo shape: single grid step, one lane chunk per channel.
    _run_case(k1, B=8, C=4, H=16, W=16)
    # Larger shape exercising the perf-path: 4 grid steps (bt=16, bf16-dense
    # sublanes) and 2 static lane chunks per channel.
    _run_case(k2, B=64, C=4, H=32, W=32)

    # TODO(synk): external `conditioner` / arbitrary `network` modules, the
    # Python-random cond_frames path (replace_cond_frames) and
    # offset_noise_level > 0 are not modeled.
    print("KERNEL_OK")
</pallas_src>

<mosaic_0001>
module attributes {stable_mosaic.version = 11 : i64} {
  func.func @kernel(%arg0: i32, %arg1: memref<4x4xf32, #tpu.memory_space<smem>>, %arg2: memref<8x4xf32, #tpu.memory_space<vmem>>, %arg3: memref<8x1024xbf16, #tpu.memory_space<vmem>>, %arg4: memref<8x1024xbf16, #tpu.memory_space<vmem>>, %arg5: memref<8x1xf32, #tpu.memory_space<vmem>>) attributes {dimension_semantics = [#tpu.dimension_semantics<parallel>], iteration_bounds = array<i64: 1>, scalar_prefetch = 1 : i64, scratch_operands = 0 : i64, tpu.core_type = #tpu.core_type<tc>, window_params = [{transform_indices = @transform_0, window_bounds = array<i64: 8, 4>}, {transform_indices = @transform_1, window_bounds = array<i64: 8, 1024>}, {transform_indices = @transform_2, window_bounds = array<i64: 8, 1024>}, {transform_indices = @transform_3, window_bounds = array<i64: 8, 1>}]} {
    %c0 = arith.constant 0 : index
    %c0_0 = arith.constant 0 : index
    %0 = vector.load %arg2[%c0, %c0_0] : memref<8x4xf32, #tpu.memory_space<vmem>>, vector<8x4xf32>
    %1 = vector.extract_strided_slice %0 {offsets = [0, 0], sizes = [8, 1], strides = [1, 1]} : vector<8x4xf32> to vector<8x1xf32>
    %2 = vector.extract_strided_slice %0 {offsets = [0, 1], sizes = [8, 1], strides = [1, 1]} : vector<8x4xf32> to vector<8x1xf32>
    %3 = vector.extract_strided_slice %0 {offsets = [0, 2], sizes = [8, 1], strides = [1, 1]} : vector<8x4xf32> to vector<8x1xf32>
    %4 = vector.extract_strided_slice %0 {offsets = [0, 3], sizes = [8, 1], strides = [1, 1]} : vector<8x4xf32> to vector<8x1xf32>
    %c0_1 = arith.constant 0 : index
    %c0_2 = arith.constant 0 : index
    %5 = memref.load %arg1[%c0_1, %c0_2] : memref<4x4xf32, #tpu.memory_space<smem>>
    %c0_3 = arith.constant 0 : index
    %c1 = arith.constant 1 : index
    %6 = memref.load %arg1[%c0_3, %c1] : memref<4x4xf32, #tpu.memory_space<smem>>
    %c0_4 = arith.constant 0 : index
    %c2 = arith.constant 2 : index
    %7 = memref.load %arg1[%c0_4, %c2] : memref<4x4xf32, #tpu.memory_space<smem>>
    %c0_5 = arith.constant 0 : index
    %c3 = arith.constant 3 : index
    %8 = memref.load %arg1[%c0_5, %c3] : memref<4x4xf32, #tpu.memory_space<smem>>
    %c1_6 = arith.constant 1 : index
    %c0_7 = arith.constant 0 : index
    %9 = memref.load %arg1[%c1_6, %c0_7] : memref<4x4xf32, #tpu.memory_space<smem>>
    %c1_8 = arith.constant 1 : index
    %c1_9 = arith.constant 1 : index
    %10 = memref.load %arg1[%c1_8, %c1_9] : memref<4x4xf32, #tpu.memory_space<smem>>
    %c1_10 = arith.constant 1 : index
    %c2_11 = arith.constant 2 : index
    %11 = memref.load %arg1[%c1_10, %c2_11] : memref<4x4xf32, #tpu.memory_space<smem>>
    %c1_12 = arith.constant 1 : index
    %c3_13 = arith.constant 3 : index
    %12 = memref.load %arg1[%c1_12, %c3_13] : memref<4x4xf32, #tpu.memory_space<smem>>
    %c2_14 = arith.constant 2 : index
    %c0_15 = arith.constant 0 : index
    %13 = memref.load %arg1[%c2_14, %c0_15] : memref<4x4xf32, #tpu.memory_space<smem>>
    %c2_16 = arith.constant 2 : index
    %c1_17 = arith.constant 1 : index
    %14 = memref.load %arg1[%c2_16, %c1_17] : memref<4x4xf32, #tpu.memory_space<smem>>
    %c2_18 = arith.constant 2 : index
    %c2_19 = arith.constant 2 : index
    %15 = memref.load %arg1[%c2_18, %c2_19] : memref<4x4xf32, #tpu.memory_space<smem>>
    %c2_20 = arith.constant 2 : index
    %c3_21 = arith.constant 3 : index
    %16 = memref.load %arg1[%c2_20, %c3_21] : memref<4x4xf32, #tpu.memory_space<smem>>
    %c3_22 = arith.constant 3 : index
    %c0_23 = arith.constant 0 : index
    %17 = memref.load %arg1[%c3_22, %c0_23] : memref<4x4xf32, #tpu.memory_space<smem>>
    %c3_24 = arith.constant 3 : index
    %c1_25 = arith.constant 1 : index
    %18 = memref.load %arg1[%c3_24, %c1_25] : memref<4x4xf32, #tpu.memory_space<smem>>
    %c3_26 = arith.constant 3 : index
    %c2_27 = arith.constant 2 : index
    %19 = memref.load %arg1[%c3_26, %c2_27] : memref<4x4xf32, #tpu.memory_space<smem>>
    %c3_28 = arith.constant 3 : index
    %c3_29 = arith.constant 3 : index
    %20 = memref.load %arg1[%c3_28, %c3_29] : memref<4x4xf32, #tpu.memory_space<smem>>
    %cst = arith.constant 0.000000e+00 : f32
    %21 = vector.broadcast %cst : f32 to vector<8x1xf32>
    %c0_30 = arith.constant 0 : index
    %c0_31 = arith.constant 0 : index
    %22 = vector.load %arg3[%c0_30, %c0_31] : memref<8x1024xbf16, #tpu.memory_space<vmem>>, vector<8x256xbf16>
    %23 = arith.extf %22 : vector<8x256xbf16> to vector<8x256xf32>
    %c0_32 = arith.constant 0 : index
    %c0_33 = arith.constant 0 : index
    %24 = vector.load %arg4[%c0_32, %c0_33] : memref<8x1024xbf16, #tpu.memory_space<vmem>>, vector<8x256xbf16>
    %25 = arith.extf %24 : vector<8x256xbf16> to vector<8x256xf32>
    %26 = vector.broadcast %1 : vector<8x1xf32> to vector<8x256xf32>
    %27 = arith.mulf %26, %25 : vector<8x256xf32>
    %28 = arith.addf %23, %27 : vector<8x256xf32>
    %c0_34 = arith.constant 0 : index
    %c256 = arith.constant 256 : index
    %29 = vector.load %arg3[%c0_34, %c256] : memref<8x1024xbf16, #tpu.memory_space<vmem>>, vector<8x256xbf16>
    %30 = arith.extf %29 : vector<8x256xbf16> to vector<8x256xf32>
    %c0_35 = arith.constant 0 : index
    %c256_36 = arith.constant 256 : index
    %31 = vector.load %arg4[%c0_35, %c256_36] : memref<8x1024xbf16, #tpu.memory_space<vmem>>, vector<8x256xbf16>
    %32 = arith.extf %31 : vector<8x256xbf16> to vector<8x256xf32>
    %33 = vector.broadcast %1 : vector<8x1xf32> to vector<8x256xf32>
    %34 = arith.mulf %33, %32 : vector<8x256xf32>
    %35 = arith.addf %30, %34 : vector<8x256xf32>
    %c0_37 = arith.constant 0 : index
    %c512 = arith.constant 512 : index
    %36 = vector.load %arg3[%c0_37, %c512] : memref<8x1024xbf16, #tpu.memory_space<vmem>>, vector<8x256xbf16>
    %37 = arith.extf %36 : vector<8x256xbf16> to vector<8x256xf32>
    %c0_38 = arith.constant 0 : index
    %c512_39 = arith.constant 512 : index
    %38 = vector.load %arg4[%c0_38, %c512_39] : memref<8x1024xbf16, #tpu.memory_space<vmem>>, vector<8x256xbf16>
    %39 = arith.extf %38 : vector<8x256xbf16> to vector<8x256xf32>
    %40 = vector.broadcast %1 : vector<8x1xf32> to vector<8x256xf32>
    %41 = arith.mulf %40, %39 : vector<8x256xf32>
    %42 = arith.addf %37, %41 : vector<8x256xf32>
    %c0_40 = arith.constant 0 : index
    %c768 = arith.constant 768 : index
    %43 = vector.load %arg3[%c0_40, %c768] : memref<8x1024xbf16, #tpu.memory_space<vmem>>, vector<8x256xbf16>
    %44 = arith.extf %43 : vector<8x256xbf16> to vector<8x256xf32>
    %c0_41 = arith.constant 0 : index
    %c768_42 = arith.constant 768 : index
    %45 = vector.load %arg4[%c0_41, %c768_42] : memref<8x1024xbf16, #tpu.memory_space<vmem>>, vector<8x256xbf16>
    %46 = arith.extf %45 : vector<8x256xbf16> to vector<8x256xf32>
    %47 = vector.broadcast %1 : vector<8x1xf32> to vector<8x256xf32>
    %48 = arith.mulf %47, %46 : vector<8x256xf32>
    %49 = arith.addf %44, %48 : vector<8x256xf32>
    %cst_43 = arith.constant 0.000000e+00 : f32
    %50 = vector.broadcast %cst_43 : f32 to vector<8x256xf32>
    %51 = vector.broadcast %5 : f32 to vector<8x256xf32>
    %52 = arith.mulf %51, %28 : vector<8x256xf32>
    %53 = vector.broadcast %6 : f32 to vector<8x256xf32>
    %54 = arith.mulf %53, %35 : vector<8x256xf32>
    %55 = arith.addf %52, %54 : vector<8x256xf32>
    %56 = vector.broadcast %7 : f32 to vector<8x256xf32>
    %57 = arith.mulf %56, %42 : vector<8x256xf32>
    %58 = arith.addf %55, %57 : vector<8x256xf32>
    %59 = vector.broadcast %8 : f32 to vector<8x256xf32>
    %60 = arith.mulf %59, %49 : vector<8x256xf32>
    %61 = arith.addf %58, %60 : vector<8x256xf32>
    %c0_44 = arith.constant 0 : index
    %c0_45 = arith.constant 0 : index
    %62 = vector.load %arg3[%c0_44, %c0_45] : memref<8x1024xbf16, #tpu.memory_space<vmem>>, vector<8x256xbf16>
    %63 = arith.extf %62 : vector<8x256xbf16> to vector<8x256xf32>
    %64 = vector.broadcast %2 : vector<8x1xf32> to vector<8x256xf32>
    %65 = arith.mulf %64, %28 : vector<8x256xf32>
    %66 = arith.subf %65, %63 : vector<8x256xf32>
    %67 = vector.broadcast %3 : vector<8x1xf32> to vector<8x256xf32>
    %68 = arith.mulf %67, %61 : vector<8x256xf32>
    %69 = arith.addf %66, %68 : vector<8x256xf32>
    %70 = arith.mulf %69, %69 : vector<8x256xf32>
    %71 = arith.addf %50, %70 : vector<8x256xf32>
    %72 = vector.broadcast %9 : f32 to vector<8x256xf32>
    %73 = arith.mulf %72, %28 : vector<8x256xf32>
    %74 = vector.broadcast %10 : f32 to vector<8x256xf32>
    %75 = arith.mulf %74, %35 : vector<8x256xf32>
    %76 = arith.addf %73, %75 : vector<8x256xf32>
    %77 = vector.broadcast %11 : f32 to vector<8x256xf32>
    %78 = arith.mulf %77, %42 : vector<8x256xf32>
    %79 = arith.addf %76, %78 : vector<8x256xf32>
    %80 = vector.broadcast %12 : f32 to vector<8x256xf32>
    %81 = arith.mulf %80, %49 : vector<8x256xf32>
    %82 = arith.addf %79, %81 : vector<8x256xf32>
    %c0_46 = arith.constant 0 : index
    %c256_47 = arith.constant 256 : index
    %83 = vector.load %arg3[%c0_46, %c256_47] : memref<8x1024xbf16, #tpu.memory_space<vmem>>, vector<8x256xbf16>
    %84 = arith.extf %83 : vector<8x256xbf16> to vector<8x256xf32>
    %85 = vector.broadcast %2 : vector<8x1xf32> to vector<8x256xf32>
    %86 = arith.mulf %85, %35 : vector<8x256xf32>
    %87 = arith.subf %86, %84 : vector<8x256xf32>
    %88 = vector.broadcast %3 : vector<8x1xf32> to vector<8x256xf32>
    %89 = arith.mulf %88, %82 : vector<8x256xf32>
    %90 = arith.addf %87, %89 : vector<8x256xf32>
    %91 = arith.mulf %90, %90 : vector<8x256xf32>
    %92 = arith.addf %71, %91 : vector<8x256xf32>
    %93 = vector.broadcast %13 : f32 to vector<8x256xf32>
    %94 = arith.mulf %93, %28 : vector<8x256xf32>
    %95 = vector.broadcast %14 : f32 to vector<8x256xf32>
    %96 = arith.mulf %95, %35 : vector<8x256xf32>
    %97 = arith.addf %94, %96 : vector<8x256xf32>
    %98 = vector.broadcast %15 : f32 to vector<8x256xf32>
    %99 = arith.mulf %98, %42 : vector<8x256xf32>
    %100 = arith.addf %97, %99 : vector<8x256xf32>
    %101 = vector.broadcast %16 : f32 to vector<8x256xf32>
    %102 = arith.mulf %101, %49 : vector<8x256xf32>
    %103 = arith.addf %100, %102 : vector<8x256xf32>
    %c0_48 = arith.constant 0 : index
    %c512_49 = arith.constant 512 : index
    %104 = vector.load %arg3[%c0_48, %c512_49] : memref<8x1024xbf16, #tpu.memory_space<vmem>>, vector<8x256xbf16>
    %105 = arith.extf %104 : vector<8x256xbf16> to vector<8x256xf32>
    %106 = vector.broadcast %2 : vector<8x1xf32> to vector<8x256xf32>
    %107 = arith.mulf %106, %42 : vector<8x256xf32>
    %108 = arith.subf %107, %105 : vector<8x256xf32>
    %109 = vector.broadcast %3 : vector<8x1xf32> to vector<8x256xf32>
    %110 = arith.mulf %109, %103 : vector<8x256xf32>
    %111 = arith.addf %108, %110 : vector<8x256xf32>
    %112 = arith.mulf %111, %111 : vector<8x256xf32>
    %113 = arith.addf %92, %112 : vector<8x256xf32>
    %114 = vector.broadcast %17 : f32 to vector<8x256xf32>
    %115 = arith.mulf %114, %28 : vector<8x256xf32>
    %116 = vector.broadcast %18 : f32 to vector<8x256xf32>
    %117 = arith.mulf %116, %35 : vector<8x256xf32>
    %118 = arith.addf %115, %117 : vector<8x256xf32>
    %119 = vector.broadcast %19 : f32 to vector<8x256xf32>
    %120 = arith.mulf %119, %42 : vector<8x256xf32>
    %121 = arith.addf %118, %120 : vector<8x256xf32>
    %122 = vector.broadcast %20 : f32 to vector<8x256xf32>
    %123 = arith.mulf %122, %49 : vector<8x256xf32>
    %124 = arith.addf %121, %123 : vector<8x256xf32>
    %c0_50 = arith.constant 0 : index
    %c768_51 = arith.constant 768 : index
    %125 = vector.load %arg3[%c0_50, %c768_51] : memref<8x1024xbf16, #tpu.memory_space<vmem>>, vector<8x256xbf16>
    %126 = arith.extf %125 : vector<8x256xbf16> to vector<8x256xf32>
    %127 = vector.broadcast %2 : vector<8x1xf32> to vector<8x256xf32>
    %128 = arith.mulf %127, %49 : vector<8x256xf32>
    %129 = arith.subf %128, %126 : vector<8x256xf32>
    %130 = vector.broadcast %3 : vector<8x1xf32> to vector<8x256xf32>
    %131 = arith.mulf %130, %124 : vector<8x256xf32>
    %132 = arith.addf %129, %131 : vector<8x256xf32>
    %133 = arith.mulf %132, %132 : vector<8x256xf32>
    %134 = arith.addf %113, %133 : vector<8x256xf32>
    %cst_52 = arith.constant dense<0.000000e+00> : vector<8xf32>
    %135 = vector.multi_reduction <add>, %134, %cst_52 [1] : vector<8x256xf32> to vector<8xf32>
    %136 = vector.shape_cast %135 : vector<8xf32> to vector<8x1xf32>
    %137 = arith.addf %21, %136 : vector<8x1xf32>
    %138 = arith.mulf %4, %137 : vector<8x1xf32>
    %c0_53 = arith.constant 0 : index
    %c0_54 = arith.constant 0 : index
    %139 = vector.load %arg5[%c0_53, %c0_54] : memref<8x1xf32, #tpu.memory_space<vmem>>, vector<8x1xf32>
    tpu.vector_store %arg5[%c0_53, %c0_54], %138 {strides = array<i32>} : memref<8x1xf32, #tpu.memory_space<vmem>>, vector<8x1xf32>,
    return
  }
  func.func @transform_0(%arg0: i32, %arg1: memref<4x4xf32, #tpu.memory_space<smem>>) -> (i32, i32) {
    %c0_i32 = arith.constant 0 : i32
    %c0_i32_0 = arith.constant 0 : i32
    return %arg0, %c0_i32 : i32, i32
  }
  func.func @transform_1(%arg0: i32, %arg1: memref<4x4xf32, #tpu.memory_space<smem>>) -> (i32, i32) {
    %c0_i32 = arith.constant 0 : i32
    %c0_i32_0 = arith.constant 0 : i32
    return %arg0, %c0_i32 : i32, i32
  }
  func.func @transform_2(%arg0: i32, %arg1: memref<4x4xf32, #tpu.memory_space<smem>>) -> (i32, i32) {
    %c0_i32 = arith.constant 0 : i32
    %c0_i32_0 = arith.constant 0 : i32
    return %arg0, %c0_i32 : i32, i32
  }
  func.func @transform_3(%arg0: i32, %arg1: memref<4x4xf32, #tpu.memory_space<smem>>) -> (i32, i32) {
    %c0_i32 = arith.constant 0 : i32
    %c0_i32_0 = arith.constant 0 : i32
    return %arg0, %c0_i32 : i32, i32
  }
}

</mosaic_0001>

<llo_original>
// kernel: tpu_custom_call.1
$region0: #{tpu_custom_call.1}
  #allocation0 [shape = 'u32[]', space=smem, size = 0x4, offset = 0x4, fixed_abs, tag = 'smem constant byte address 0x4 - core index']
  #allocation1 [shape = 'u32[144,128]{1,0:T(1,128)}', space=vmem, size = 0x12000, scoped, tag = 'internal scratch']
  #allocation2 [shape = 's32[1]{0}', space=sflag, size = 0x4, scoped, tag = 'scoped memory for tpu_custom_call.1']
  #allocation3 [shape = 'u8[2048]{0}', space=smem, size = 0x800, scoped, tag = 'prefetched SMEM operand 0']
  %s0 = inlined_call_operand.vmem [shape: f32[4,4], index: 0, kind: input, shape index: {}]
  %s1 = inlined_call_operand.vmem [shape: f32[8,4], index: 1, kind: input, shape index: {}]
  %s2 = inlined_call_operand.hbm [shape: bf16[8,1024], index: 2, kind: input, shape index: {}]
  %s3 = inlined_call_operand.hbm [shape: bf16[8,1024], index: 3, kind: input, shape index: {}]
  %s4 = inlined_call_operand.vmem [shape: f32[8,1], index: 4, kind: output, shape index: {}]
  %s5 = sld [smem:[#allocation0]]
  $region30: #{tpu_custom_call.1} parent=0
    _
  %s7 = ssub.s32 1, %s5
  %s8 = scalar_select 0, %s7, %s5
  %s9 = sshll.u32 %s0, 4
  %s10 = int_to_ptr.vmem [resolvable:$true] %s9
  %12 = dma.vmem_to_smem %s10, 64, [#allocation3], [#allocation2]
  %13 = dma.done [#allocation2], 64
  %14 = sfence
  $region1: #{tpu_custom_call.1} parent=0
    #allocation4 [shape = 'u8[16384]{0}', space=vmem, size = 0x4000, scoped, tag = 'input window, operand 2, single buffered']
    #allocation5 [shape = 's32[1]{0}', space=sflag, size = 0x4, scoped, tag = 'scoped memory for tpu_custom_call.1']
    #allocation6 [shape = 'u8[16384]{0}', space=vmem, size = 0x4000, scoped, tag = 'input window, operand 3, single buffered']
    #allocation7 [shape = 's32[1]{0}', space=sflag, size = 0x4, scoped, tag = 'scoped memory for tpu_custom_call.1']
    %15 = vsyncpa [#allocation5], 0
    %16 = vsyncpa [#allocation7], 0
    // Predicated region
    $region2: #{tpu_custom_call.1} parent=1 // pred_check
      _
    $region3: #{tpu_custom_call.1} parent=1 // pred_check_branch
      %18 = sbr.rel (0) target = $region5
    $region4: #{tpu_custom_call.1} parent=1 // pred_region
      _
    $region5: #{tpu_custom_call.1} parent=1 // pred_fallthru
      _
    // Predicated region
    $region6: #{tpu_custom_call.1} parent=1 // pred_check
      _
    $region7: #{tpu_custom_call.1} parent=1 // pred_check_branch
      %20 = sbr.rel (0) target = $region9
    $region8: #{tpu_custom_call.1} parent=1 // pred_region
      %s22 = ssub.s32 512, 512
      %23 = vsyncadd [#allocation5], %s22
      %s25 = sshll.u32 [#allocation4], 4
      %s26 = int_to_ptr.vmem [resolvable:$true] %s25
      %28 = dma.hbm_to_vmem [thread:$0]  %s2, 512, %s26, [#allocation5]
    $region9: #{tpu_custom_call.1} parent=1 // pred_fallthru
      _
    // Predicated region
    $region10: #{tpu_custom_call.1} parent=1 // pred_check
      _
    $region11: #{tpu_custom_call.1} parent=1 // pred_check_branch
      %30 = sbr.rel (0) target = $region13
    $region12: #{tpu_custom_call.1} parent=1 // pred_region
      %s32 = ssub.s32 512, 512
      %33 = vsyncadd [#allocation7], %s32
      %s35 = sshll.u32 [#allocation6], 4
      %s36 = int_to_ptr.vmem [resolvable:$true] %s35
      %38 = dma.hbm_to_vmem [thread:$0]  %s3, 512, %s36, [#allocation7]
    $region13: #{tpu_custom_call.1} parent=1 // pred_fallthru
      _
    // Predicated region
    $region14: #{tpu_custom_call.1} parent=1 // pred_check
      _
    $region15: #{tpu_custom_call.1} parent=1 // pred_check_branch
      %40 = sbr.rel (0) target = $region17
    $region16: #{tpu_custom_call.1} parent=1 // pred_region
      %41 = dma.done [#allocation5], 512
    $region17: #{tpu_custom_call.1} parent=1 // pred_fallthru
      _
    // Predicated region
    $region18: #{tpu_custom_call.1} parent=1 // pred_check
      _
    $region19: #{tpu_custom_call.1} parent=1 // pred_check_branch
      %43 = sbr.rel (0) target = $region21
    $region20: #{tpu_custom_call.1} parent=1 // pred_region
      %44 = dma.done [#allocation7], 512
    $region21: #{tpu_custom_call.1} parent=1 // pred_fallthru
      _
    %v45 = vld [vmem:[%s1] sm:$0xff]
    %s46 = sld [smem:[#allocation3]]
    %s47 = sld [smem:[#allocation3 + $0x1]]
    %s48 = sld [smem:[#allocation3 + $0x2]]
    %s49 = sld [smem:[#allocation3 + $0x3]]
    %s50 = sld [smem:[#allocation3 + $0x80]]
    %s51 = sld [smem:[#allocation3 + $0x81]]
    %s52 = sld [smem:[#allocation3 + $0x82]]
    %s53 = sld [smem:[#allocation3 + $0x83]]
    %s54 = sld [smem:[#allocation3 + $0x100]]
    %s55 = sld [smem:[#allocation3 + $0x101]]
    %s56 = sld [smem:[#allocation3 + $0x102]]
    %s57 = sld [smem:[#allocation3 + $0x103]]
    %s58 = sld [smem:[#allocation3 + $0x180]]
    %s59 = sld [smem:[#allocation3 + $0x181]]
    %s60 = sld [smem:[#allocation3 + $0x182]]
    %s61 = sld [smem:[#allocation3 + $0x183]]
    %v62 = vld [vmem:[#allocation4] sm:$0xff]
    %v63 = vunpack.c.l.bf16 %v62
    %v64 = vunpack.c.h.bf16 %v62
    %v65 = vld [vmem:[#allocation6] sm:$0xff]
    %v66 = vunpack.c.l.bf16 %v65
    %v67 = vunpack.c.h.bf16 %v65
    %69 = vset.pattern.permute.xlu0 0
    %70 = vperm.xlu0 %69, %v45
    %v71 = vpop.permute.xlu0 %70
    %v73 = vmul.f32 %v71, %v66
    %v74 = vmul.f32 %v71, %v67
    %v75 = vadd.f32 %v63, %v73
    %v76 = vadd.f32 %v64, %v74
    %v77 = vld [vmem:[#allocation4 + $0x8] sm:$0xff]
    %v78 = vunpack.c.l.bf16 %v77
    %v79 = vunpack.c.h.bf16 %v77
    %v80 = vld [vmem:[#allocation6 + $0x8] sm:$0xff]
    %v81 = vunpack.c.l.bf16 %v80
    %v82 = vunpack.c.h.bf16 %v80
    %v83 = vmul.f32 %v71, %v81
    %v84 = vmul.f32 %v71, %v82
    %v85 = vadd.f32 %v78, %v83
    %v86 = vadd.f32 %v79, %v84
    %v87 = vld [vmem:[#allocation4 + $0x10] sm:$0xff]
    %v88 = vunpack.c.l.bf16 %v87
    %v89 = vunpack.c.h.bf16 %v87
    %v90 = vld [vmem:[#allocation6 + $0x10] sm:$0xff]
    %v91 = vunpack.c.l.bf16 %v90
    %v92 = vunpack.c.h.bf16 %v90
    %v93 = vmul.f32 %v71, %v91
    %v94 = vmul.f32 %v71, %v92
    %v95 = vadd.f32 %v88, %v93
    %v96 = vadd.f32 %v89, %v94
    %v97 = vld [vmem:[#allocation4 + $0x18] sm:$0xff]
    %v98 = vunpack.c.l.bf16 %v97
    %v99 = vunpack.c.h.bf16 %v97
    %v100 = vld [vmem:[#allocation6 + $0x18] sm:$0xff]
    %v101 = vunpack.c.l.bf16 %v100
    %v102 = vunpack.c.h.bf16 %v100
    %v103 = vmul.f32 %v71, %v101
    %v104 = vmul.f32 %v71, %v102
    %v105 = vadd.f32 %v98, %v103
    %v106 = vadd.f32 %v99, %v104
    %v107 = vstv %s46
    %v108 = vmul.f32 %v107, %v75
    %v109 = vmul.f32 %v107, %v76
    %v110 = vstv %s47
    %v111 = vmul.f32 %v110, %v85
    %v112 = vmul.f32 %v110, %v86
    %v113 = vadd.f32 %v108, %v111
    %v114 = vadd.f32 %v109, %v112
    %v115 = vstv %s48
    %v116 = vmul.f32 %v115, %v95
    %v117 = vmul.f32 %v115, %v96
    %v118 = vadd.f32 %v113, %v116
    %v119 = vadd.f32 %v114, %v117
    %v120 = vstv %s49
    %v121 = vmul.f32 %v120, %v105
    %v122 = vmul.f32 %v120, %v106
    %v123 = vadd.f32 %v118, %v121
    %v124 = vadd.f32 %v119, %v122
    %125 = vset.pattern.permute.xlu0 1
    %126 = vperm.xlu0 %125, %v45
    %v127 = vpop.permute.xlu0 %126
    %v129 = vmul.f32 %v127, %v75
    %v130 = vmul.f32 %v127, %v76
    %v131 = vsub.f32 %v129, %v63
    %v132 = vsub.f32 %v130, %v64
    %133 = vset.pattern.permute.xlu0 2
    %134 = vperm.xlu0 %133, %v45
    %v135 = vpop.permute.xlu0 %134
    %v137 = vmul.f32 %v135, %v123
    %v138 = vmul.f32 %v135, %v124
    %v139 = vadd.f32 %v131, %v137
    %v140 = vadd.f32 %v132, %v138
    %v141 = vmul.f32 %v139, %v139
    %v142 = vmul.f32 %v140, %v140
    %v143 = vadd.f32 %v141, 0.0
    %v144 = vadd.f32 %v142, 0.0
    %v145 = vstv %s50
    %v146 = vmul.f32 %v145, %v75
    %v147 = vmul.f32 %v145, %v76
    %v148 = vstv %s51
    %v149 = vmul.f32 %v148, %v85
    %v150 = vmul.f32 %v148, %v86
    %v151 = vadd.f32 %v146, %v149
    %v152 = vadd.f32 %v147, %v150
    %v153 = vstv %s52
    %v154 = vmul.f32 %v153, %v95
    %v155 = vmul.f32 %v153, %v96
    %v156 = vadd.f32 %v151, %v154
    %v157 = vadd.f32 %v152, %v155
    %v158 = vstv %s53
    %v159 = vmul.f32 %v158, %v105
    %v160 = vmul.f32 %v158, %v106
    %v161 = vadd.f32 %v156, %v159
    %v162 = vadd.f32 %v157, %v160
    %v163 = vmul.f32 %v127, %v85
    %v164 = vmul.f32 %v127, %v86
    %v165 = vsub.f32 %v163, %v78
    %v166 = vsub.f32 %v164, %v79
    %v167 = vmul.f32 %v135, %v161
    %v168 = vmul.f32 %v135, %v162
    %v169 = vadd.f32 %v165, %v167
    %v170 = vadd.f32 %v166, %v168
    %v171 = vmul.f32 %v169, %v169
    %v172 = vmul.f32 %v170, %v170
    %v173 = vadd.f32 %v143, %v171
    %v174 = vadd.f32 %v144, %v172
    %v175 = vstv %s54
    %v176 = vmul.f32 %v175, %v75
    %v177 = vmul.f32 %v175, %v76
    %v178 = vstv %s55
    %v179 = vmul.f32 %v178, %v85
    %v180 = vmul.f32 %v178, %v86
    %v181 = vadd.f32 %v176, %v179
    %v182 = vadd.f32 %v177, %v180
    %v183 = vstv %s56
    %v184 = vmul.f32 %v183, %v95
    %v185 = vmul.f32 %v183, %v96
    %v186 = vadd.f32 %v181, %v184
    %v187 = vadd.f32 %v182, %v185
    %v188 = vstv %s57
    %v189 = vmul.f32 %v188, %v105
    %v190 = vmul.f32 %v188, %v106
    %v191 = vadd.f32 %v186, %v189
    %v192 = vadd.f32 %v187, %v190
    %v193 = vmul.f32 %v127, %v95
    %v194 = vmul.f32 %v127, %v96
    %v195 = vsub.f32 %v193, %v88
    %v196 = vsub.f32 %v194, %v89
    %v197 = vmul.f32 %v135, %v191
    %v198 = vmul.f32 %v135, %v192
    %v199 = vadd.f32 %v195, %v197
    %v200 = vadd.f32 %v196, %v198
    %v201 = vmul.f32 %v199, %v199
    %v202 = vmul.f32 %v200, %v200
    %v203 = vadd.f32 %v173, %v201
    %v204 = vadd.f32 %v174, %v202
    %v205 = vstv %s58
    %v206 = vmul.f32 %v205, %v75
    %v207 = vmul.f32 %v205, %v76
    %v208 = vstv %s59
    %v209 = vmul.f32 %v208, %v85
    %v210 = vmul.f32 %v208, %v86
    %v211 = vadd.f32 %v206, %v209
    %v212 = vadd.f32 %v207, %v210
    %v213 = vstv %s60
    %v214 = vmul.f32 %v213, %v95
    %v215 = vmul.f32 %v213, %v96
    %v216 = vadd.f32 %v211, %v214
    %v217 = vadd.f32 %v212, %v215
    %v218 = vstv %s61
    %v219 = vmul.f32 %v218, %v105
    %v220 = vmul.f32 %v218, %v106
    %v221 = vadd.f32 %v216, %v219
    %v222 = vadd.f32 %v217, %v220
    %v223 = vmul.f32 %v127, %v105
    %v224 = vmul.f32 %v127, %v106
    %v225 = vsub.f32 %v223, %v98
    %v226 = vsub.f32 %v224, %v99
    %v227 = vmul.f32 %v135, %v221
    %v228 = vmul.f32 %v135, %v222
    %v229 = vadd.f32 %v225, %v227
    %v230 = vadd.f32 %v226, %v228
    %v231 = vmul.f32 %v229, %v229
    %v232 = vmul.f32 %v230, %v230
    %v233 = vadd.f32 %v203, %v231
    %v234 = vadd.f32 %v204, %v232
    %v235 = vadd.f32 %v233, %v234
    %236 = vadd.xlane.f32.xlu0 %v235
    %v237 = vpop.xlane.xlu0 %236
    %v238 = vadd.f32 %v237, 0.0
    %v239 = vmul.f32 %v45, %v238
    %241 = vrot.lane.b32.xlu0 %v239, 125
    %v242 = vpop.permute.xlu0 %241
    %vm244 = vcmask 7168
    %245 = vst.msk [vmem:[%s4] sm:$0xff] %vm244, %v242
    // Predicated region
    $region22: #{tpu_custom_call.1} parent=1 // pred_check
      _
    $region23: #{tpu_custom_call.1} parent=1 // pred_check_branch
      %247 = sbr.rel (0) target = $region25
    $region24: #{tpu_custom_call.1} parent=1 // pred_region
      _
    $region25: #{tpu_custom_call.1} parent=1 // pred_fallthru
      _
    // Predicated region
    $region26: #{tpu_custom_call.1} parent=1 // pred_check
      _
    $region27: #{tpu_custom_call.1} parent=1 // pred_check_branch
      %249 = sbr.rel (0) target = $region29
    $region28: #{tpu_custom_call.1} parent=1 // pred_region
      _
    $region29: #{tpu_custom_call.1} parent=1 // pred_fallthru
      _
    %250 = vsyncpa [#allocation5], 1
    %251 = vsyncpa [#allocation7], 1

</llo_original>
